<compile_context>
chip_gen: v7x
topology: tpu7x:2x2x1
jax: 0.10.0
libtpu: 0.0.40
codegen_flags: <defaults>
</compile_context>

<pallas_src>
import jax
import jax.numpy as jnp
from jax.experimental import pallas as pl
from jax.experimental.pallas import tpu as pltpu

N_EMBED = 32
HIDDEN = 4 * N_EMBED  # 128
DROPOUT = 0.2         # eval-mode forward: dropout is identity
TILE_N = 1024         # token-tile rows (f32 out tile = 128 KiB, bf16 x tile = 64 KiB)


def _round_up(v, m):
    return ((v + m - 1) // m) * m


def _ffwd_kernel(x_ref, w1_ref, b1_ref, w2_ref, b2_ref, o_ref):
    # x_ref:  (TN, C)   bf16      w1_ref: (C, H) bf16   b1_ref: (1, H) f32
    # w2_ref: (H, C)    bf16      b2_ref: (1, C) f32    o_ref:  (TN, C) f32
    # bf16 MXU operands, f32 accumulation, f32 epilogue.
    h = jnp.dot(x_ref[...], w1_ref[...], preferred_element_type=jnp.float32)
    h = jnp.maximum(h + b1_ref[...], 0.0)                       # bias + ReLU (f32, VPU)
    y = jnp.dot(h.astype(jnp.bfloat16), w2_ref[...],
                preferred_element_type=jnp.float32)
    y = y + b2_ref[...]
    o_ref[...] = y.astype(o_ref.dtype)


def feed_forward(x_2d, w1, b1, w2, b2, *, tile_n=TILE_N):
    """x_2d: (N, n_embed) float32 -> (N, n_embed) float32."""
    n, c = x_2d.shape
    hid = w1.shape[1]

    # Choose a token tile (multiple of 8 sublanes) and pad N to a whole number
    # of tiles so no tail tile reads/writes out of bounds.
    tn = min(tile_n, _round_up(n, 8))
    n_pad = _round_up(n, tn)

    # Cast ONCE in the wrapper: halves HBM bytes for the activation stream and
    # means the VMEM-resident weights are already in the MXU dtype (no per-tile
    # VPU upcast inside the kernel).
    x_bf = x_2d.astype(jnp.bfloat16)
    if n_pad != n:
        x_bf = jnp.pad(x_bf, ((0, n_pad - n), (0, 0)))
    w1_bf = w1.astype(jnp.bfloat16)
    w2_bf = w2.astype(jnp.bfloat16)
    b1_2d = b1.reshape(1, hid).astype(jnp.float32)
    b2_2d = b2.reshape(1, c).astype(jnp.float32)

    out = pl.pallas_call(
        _ffwd_kernel,
        out_shape=jax.ShapeDtypeStruct((n_pad, c), x_2d.dtype),
        grid_spec=pl.GridSpec(
            grid=(n_pad // tn,),
            in_specs=[
                pl.BlockSpec((tn, c), lambda i: (i, 0)),     # x: tiled over tokens
                pl.BlockSpec((c, hid), lambda i: (0, 0)),    # w1: resident
                pl.BlockSpec((1, hid), lambda i: (0, 0)),    # b1: resident
                pl.BlockSpec((hid, c), lambda i: (0, 0)),    # w2: resident
                pl.BlockSpec((1, c), lambda i: (0, 0)),      # b2: resident
            ],
            out_specs=pl.BlockSpec((tn, c), lambda i: (i, 0)),
        ),
        compiler_params=pltpu.CompilerParams(
            # Independent token tiles -> shard across TensorCores (v7x megacore).
            dimension_semantics=("parallel",)),
    )(x_bf, w1_bf, b1_2d, w2_bf, b2_2d)

    if n_pad != n:
        out = out[:n]
    return out


def feed_forward_module(x, params):
    """x: (B, T, n_embed) -> (B, T, n_embed), matching FeedForward.forward (eval)."""
    b, t, c = x.shape
    y = feed_forward(x.reshape(b * t, c), *params)
    return y.reshape(b, t, c)


def init_params(key, n_embed=N_EMBED):
    # Deterministic init mimicking nn.Linear defaults (uniform +-1/sqrt(fan_in)).
    k1, k2, k3, k4 = jax.random.split(key, 4)
    hidden = 4 * n_embed
    bound1 = 1.0 / jnp.sqrt(n_embed)
    bound2 = 1.0 / jnp.sqrt(hidden)
    w1 = jax.random.uniform(k1, (n_embed, hidden), jnp.float32, -bound1, bound1)
    b1 = jax.random.uniform(k2, (hidden,), jnp.float32, -bound1, bound1)
    w2 = jax.random.uniform(k3, (hidden, n_embed), jnp.float32, -bound2, bound2)
    b2 = jax.random.uniform(k4, (n_embed,), jnp.float32, -bound2, bound2)
    return w1, b1, w2, b2


if __name__ == "__main__":
    key = jax.random.PRNGKey(0)
    kx, kp = jax.random.split(key)
    B, T = 2, 8
    x = jax.random.normal(kx, (B, T, N_EMBED), dtype=jnp.float32)
    params = init_params(kp)

    out = feed_forward_module(x, params)
    out = jax.block_until_ready(out)

    # Reference in plain JAX (eval-mode dropout = identity). Kernel feeds the
    # MXU bf16 operands, so compare with a bf16-appropriate tolerance.
    w1, b1, w2, b2 = params
    ref = jnp.maximum(x @ w1 + b1, 0.0) @ w2 + b2
    assert out.shape == (B, T, N_EMBED)
    assert jnp.allclose(out, ref, atol=2e-2, rtol=2e-2), (
        float(jnp.max(jnp.abs(out - ref))))
    print("KERNEL_OK")
</pallas_src>

<mosaic_0001>
module attributes {stable_mosaic.version = 11 : i64} {
  func.func @_ffwd_kernel(%arg0: i32, %arg1: memref<16x32xbf16, #tpu.memory_space<vmem>>, %arg2: memref<32x128xbf16, #tpu.memory_space<vmem>>, %arg3: memref<1x128xf32, #tpu.memory_space<vmem>>, %arg4: memref<128x32xbf16, #tpu.memory_space<vmem>>, %arg5: memref<1x32xf32, #tpu.memory_space<vmem>>, %arg6: memref<16x32xf32, #tpu.memory_space<vmem>>) attributes {dimension_semantics = [#tpu.dimension_semantics<parallel>], iteration_bounds = array<i64: 1>, scalar_prefetch = 0 : i64, scratch_operands = 0 : i64, tpu.core_type = #tpu.core_type<tc>, window_params = [{transform_indices = @transform_0, window_bounds = array<i64: 16, 32>}, {pipeline_mode = #tpu.pipeline_mode<synchronous>, transform_indices = @transform_1, window_bounds = array<i64: 32, 128>}, {pipeline_mode = #tpu.pipeline_mode<synchronous>, transform_indices = @transform_2, window_bounds = array<i64: 1, 128>}, {pipeline_mode = #tpu.pipeline_mode<synchronous>, transform_indices = @transform_3, window_bounds = array<i64: 128, 32>}, {pipeline_mode = #tpu.pipeline_mode<synchronous>, transform_indices = @transform_4, window_bounds = array<i64: 1, 32>}, {transform_indices = @transform_5, window_bounds = array<i64: 16, 32>}]} {
    %c0 = arith.constant 0 : index
    %c0_0 = arith.constant 0 : index
    %0 = vector.load %arg1[%c0, %c0_0] : memref<16x32xbf16, #tpu.memory_space<vmem>>, vector<16x32xbf16>
    %c0_1 = arith.constant 0 : index
    %c0_2 = arith.constant 0 : index
    %1 = vector.load %arg2[%c0_1, %c0_2] : memref<32x128xbf16, #tpu.memory_space<vmem>>, vector<32x128xbf16>
    %cst = arith.constant dense<0.000000e+00> : vector<16x128xf32>
    %2 = tpu.matmul %0, %1, %cst {dimension_numbers = #tpu.dot_dimension_numbers<[1], [0], [0], [1], [0, 0, 1, 1], [], []>} : vector<16x32xbf16>, vector<32x128xbf16>, vector<16x128xf32> -> vector<16x128xf32>
    %c0_3 = arith.constant 0 : index
    %c0_4 = arith.constant 0 : index
    %3 = vector.load %arg3[%c0_3, %c0_4] : memref<1x128xf32, #tpu.memory_space<vmem>>, vector<1x128xf32>
    %4 = vector.broadcast %3 : vector<1x128xf32> to vector<16x128xf32>
    %5 = arith.addf %2, %4 : vector<16x128xf32>
    %cst_5 = arith.constant 0.000000e+00 : f32
    %6 = vector.broadcast %cst_5 : f32 to vector<16x128xf32>
    %7 = arith.maximumf %5, %6 : vector<16x128xf32>
    %8 = arith.truncf %7 : vector<16x128xf32> to vector<16x128xbf16>
    %c0_6 = arith.constant 0 : index
    %c0_7 = arith.constant 0 : index
    %9 = vector.load %arg4[%c0_6, %c0_7] : memref<128x32xbf16, #tpu.memory_space<vmem>>, vector<128x32xbf16>
    %cst_8 = arith.constant dense<0.000000e+00> : vector<16x32xf32>
    %10 = tpu.matmul %8, %9, %cst_8 {dimension_numbers = #tpu.dot_dimension_numbers<[1], [0], [0], [1], [0, 0, 1, 1], [], []>} : vector<16x128xbf16>, vector<128x32xbf16>, vector<16x32xf32> -> vector<16x32xf32>
    %c0_9 = arith.constant 0 : index
    %c0_10 = arith.constant 0 : index
    %11 = vector.load %arg5[%c0_9, %c0_10] : memref<1x32xf32, #tpu.memory_space<vmem>>, vector<1x32xf32>
    %12 = vector.broadcast %11 : vector<1x32xf32> to vector<16x32xf32>
    %13 = arith.addf %10, %12 : vector<16x32xf32>
    %c0_11 = arith.constant 0 : index
    %c0_12 = arith.constant 0 : index
    %14 = vector.load %arg6[%c0_11, %c0_12] : memref<16x32xf32, #tpu.memory_space<vmem>>, vector<16x32xf32>
    tpu.vector_store %arg6[%c0_11, %c0_12], %13 {strides = array<i32>} : memref<16x32xf32, #tpu.memory_space<vmem>>, vector<16x32xf32>,
    return
  }
  func.func @transform_0(%arg0: i32) -> (i32, i32) {
    %c0_i32 = arith.constant 0 : i32
    %c0_i32_0 = arith.constant 0 : i32
    return %arg0, %c0_i32 : i32, i32
  }
  func.func @transform_1(%arg0: i32) -> (i32, i32) {
    %c0_i32 = arith.constant 0 : i32
    %c0_i32_0 = arith.constant 0 : i32
    %c0_i32_1 = arith.constant 0 : i32
    return %c0_i32, %c0_i32_0 : i32, i32
  }
  func.func @transform_2(%arg0: i32) -> (i32, i32) {
    %c0_i32 = arith.constant 0 : i32
    %c0_i32_0 = arith.constant 0 : i32
    %c0_i32_1 = arith.constant 0 : i32
    return %c0_i32, %c0_i32_0 : i32, i32
  }
  func.func @transform_3(%arg0: i32) -> (i32, i32) {
    %c0_i32 = arith.constant 0 : i32
    %c0_i32_0 = arith.constant 0 : i32
    %c0_i32_1 = arith.constant 0 : i32
    return %c0_i32, %c0_i32_0 : i32, i32
  }
  func.func @transform_4(%arg0: i32) -> (i32, i32) {
    %c0_i32 = arith.constant 0 : i32
    %c0_i32_0 = arith.constant 0 : i32
    %c0_i32_1 = arith.constant 0 : i32
    return %c0_i32, %c0_i32_0 : i32, i32
  }
  func.func @transform_5(%arg0: i32) -> (i32, i32) {
    %c0_i32 = arith.constant 0 : i32
    %c0_i32_0 = arith.constant 0 : i32
    return %arg0, %c0_i32 : i32, i32
  }
}

</mosaic_0001>

<llo_original>
// kernel: tpu_custom_call.1
$region0: #{tpu_custom_call.1}
  #allocation0 [shape = 'u32[]', space=smem, size = 0x4, offset = 0x4, fixed_abs, tag = 'smem constant byte address 0x4 - core index']
  #allocation1 [shape = 'u32[144,128]{1,0:T(1,128)}', space=vmem, size = 0x12000, scoped, tag = 'internal scratch']
  %s0 = inlined_call_operand.vmem [shape: bf16[16,32], index: 0, kind: input, shape index: {}]
  %s1 = inlined_call_operand.vmem [shape: bf16[32,128], index: 1, kind: input, shape index: {}]
  %s2 = inlined_call_operand.vmem [shape: f32[1,128], index: 2, kind: input, shape index: {}]
  %s3 = inlined_call_operand.vmem [shape: bf16[128,32], index: 3, kind: input, shape index: {}]
  %s4 = inlined_call_operand.vmem [shape: f32[1,32], index: 4, kind: input, shape index: {}]
  %s5 = inlined_call_operand.hbm [shape: f32[16,32], index: 5, kind: output, shape index: {}]
  %s6 = sld [smem:[#allocation0]]
  $region30: #{tpu_custom_call.1} parent=0
    _
  %s8 = ssub.s32 1, %s6
  %s9 = scalar_select 0, %s8, %s6
  $region1: #{tpu_custom_call.1} parent=0
    #allocation2 [shape = 'u8[8192]{0}', space=vmem, size = 0x2000, scoped, tag = 'output window, operand 0, single buffered']
    #allocation3 [shape = 's32[1]{0}', space=sflag, size = 0x4, scoped, tag = 'scoped memory for tpu_custom_call.1']
    %10 = vsyncpa [#allocation3], 0
    // Predicated region
    $region2: #{tpu_custom_call.1} parent=1 // pred_check
      _
    $region3: #{tpu_custom_call.1} parent=1 // pred_check_branch
      %12 = sbr.rel (0) target = $region5
    $region4: #{tpu_custom_call.1} parent=1 // pred_region
      _
    $region5: #{tpu_custom_call.1} parent=1 // pred_fallthru
      _
    // Predicated region
    $region6: #{tpu_custom_call.1} parent=1 // pred_check
      _
    $region7: #{tpu_custom_call.1} parent=1 // pred_check_branch
      %14 = sbr.rel (0) target = $region9
    $region8: #{tpu_custom_call.1} parent=1 // pred_region
      _
    $region9: #{tpu_custom_call.1} parent=1 // pred_fallthru
      _
    // Predicated region
    $region10: #{tpu_custom_call.1} parent=1 // pred_check
      _
    $region11: #{tpu_custom_call.1} parent=1 // pred_check_branch
      %16 = sbr.rel (0) target = $region13
    $region12: #{tpu_custom_call.1} parent=1 // pred_region
      _
    $region13: #{tpu_custom_call.1} parent=1 // pred_fallthru
      _
    // Predicated region
    $region14: #{tpu_custom_call.1} parent=1 // pred_check
      _
    $region15: #{tpu_custom_call.1} parent=1 // pred_check_branch
      %18 = sbr.rel (0) target = $region17
    $region16: #{tpu_custom_call.1} parent=1 // pred_region
      _
    $region17: #{tpu_custom_call.1} parent=1 // pred_fallthru
      _
    // Predicated region
    $region18: #{tpu_custom_call.1} parent=1 // pred_check
      _
    $region19: #{tpu_custom_call.1} parent=1 // pred_check_branch
      %20 = sbr.rel (0) target = $region21
    $region20: #{tpu_custom_call.1} parent=1 // pred_region
      _
    $region21: #{tpu_custom_call.1} parent=1 // pred_fallthru
      _
    %v22 = vld [vmem:[%s0] sm:$0xf]
    %v23 = vld [vmem:[%s0 + $0x4] sm:$0xf]
    %v24 = vld [vmem:[%s1] sm:$0xf]
    %v25 = vld [vmem:[%s1 + $0x4] sm:$0xf]
    %v26 = vld [vmem:[%s1 + $0x8] sm:$0xf]
    %v27 = vld [vmem:[%s1 + $0xc] sm:$0xf]
    %v28 = vld [vmem:[%s2] sm:$0x1]
    %v30 = vlaneseq
    %v31 = vshrl.u32 %v30, 7
    %v32 = vsub.s32 0, %v31
    %v33 = vrot.slane %v28, %v32
    %v37 = vunpack.c.l.b16 %v22
    %v38 = vunpack.c.l.b16 %v23
    %v39 = vpack.c.b16 %v38, %v37
    %v44 = vunpack.c.l.b16 %v24
    %v45 = vunpack.c.l.b16 %v25
    %v46 = vunpack.c.l.b16 %v26
    %v47 = vunpack.c.l.b16 %v27
    %v48 = vpack.c.b16 %v45, %v44
    %v49 = vpack.c.b16 %v47, %v46
    %vm52 = vcmask 261120
    %v54 = vsel %vm52, %v39, 0
    %56 = vmatprep.subr.bf16.mxu0 0
    %57 = vmatpush1.bf16.msra.mxu0 %v48
    %58 = vmatprep.subr.bf16.mxu0 0
    %59 = vmatpush1.bf16.msra.mxu0 %v49
    %60 = vmatprep.subr.bf16.mxu0 0
    %61 = vmatpush1.bf16.msra.mxu0 0
    %62 = vmatprep.subr.bf16.mxu0 0
    %63 = vmatpush1.bf16.msra.mxu0 0
    %64 = vmatprep.subr.bf16.mxu0 0
    %65 = vmatpush1.bf16.msra.mxu0 0
    %66 = vmatprep.subr.bf16.mxu0 0
    %67 = vmatpush1.bf16.msra.mxu0 0
    %68 = vmatprep.subr.bf16.mxu0 0
    %69 = vmatpush1.bf16.msra.mxu0 0
    %70 = vmatprep.subr.bf16.mxu0 0
    %71 = vmatpush1.bf16.msra.mxu0 0
    %72 = vmatprep.subr.bf16.mxu0 0
    %73 = vmatpush1.bf16.msra.mxu0 0
    %74 = vmatprep.subr.bf16.mxu0 0
    %75 = vmatpush1.bf16.msra.mxu0 0
    %76 = vmatprep.subr.bf16.mxu0 0
    %77 = vmatpush1.bf16.msra.mxu0 0
    %78 = vmatprep.subr.bf16.mxu0 0
    %79 = vmatpush1.bf16.msra.mxu0 0
    %80 = vmatprep.subr.bf16.mxu0 0
    %81 = vmatpush1.bf16.msra.mxu0 0
    %82 = vmatprep.subr.bf16.mxu0 0
    %83 = vmatpush1.bf16.msra.mxu0 0
    %84 = vmatprep.subr.bf16.mxu0 0
    %85 = vmatpush1.bf16.msra.mxu0 0
    %86 = vmatprep.subr.bf16.mxu0 0
    %87 = vmatpush1.bf16.msra.mxu0 0
    %88 = vmatprep.mubr.bf16.mxu0 0
    %89 = vmatmul.mubr.bf16.gmra.mrb[0].mxu0 %v54
    %v90 = vpop.f32.mrb[0].mxu0
    %v91 = vadd.f32 %v33, %v90
    %v92 = vpop.f32.mrb[0].mxu0
    %v93 = vpop.f32.mrb[0].mxu0
    %v94 = vadd.f32 %v33, %v93
    %v95 = vpop.f32.mrb[0].mxu0
    %96 = vdwg.mxu0
    %v97 = vmax.f32 %v91, 0.0
    %v98 = vmax.f32 %v94, 0.0
    %v99 = vpack.c.bf16 %v98, %v97
    %v100 = vld [vmem:[%s3] sm:$0xf]
    %v101 = vld [vmem:[%s3 + $0x4] sm:$0xf]
    %v102 = vld [vmem:[%s3 + $0x8] sm:$0xf]
    %v103 = vld [vmem:[%s3 + $0xc] sm:$0xf]
    %v104 = vld [vmem:[%s3 + $0x10] sm:$0xf]
    %v105 = vld [vmem:[%s3 + $0x14] sm:$0xf]
    %v106 = vld [vmem:[%s3 + $0x18] sm:$0xf]
    %v107 = vld [vmem:[%s3 + $0x1c] sm:$0xf]
    %v108 = vld [vmem:[%s3 + $0x20] sm:$0xf]
    %v109 = vld [vmem:[%s3 + $0x24] sm:$0xf]
    %v110 = vld [vmem:[%s3 + $0x28] sm:$0xf]
    %v111 = vld [vmem:[%s3 + $0x2c] sm:$0xf]
    %v112 = vld [vmem:[%s3 + $0x30] sm:$0xf]
    %v113 = vld [vmem:[%s3 + $0x34] sm:$0xf]
    %v114 = vld [vmem:[%s3 + $0x38] sm:$0xf]
    %v115 = vld [vmem:[%s3 + $0x3c] sm:$0xf]
    %v116 = vld [vmem:[%s4] sm:$0x1]
    %v118 = vlaneseq
    %v119 = vshrl.u32 %v118, 7
    %v120 = vsub.s32 0, %v119
    %v121 = vrot.slane %v116, %v120
    %v139 = vunpack.c.l.b16 %v100
    %v140 = vunpack.c.l.b16 %v101
    %v141 = vunpack.c.l.b16 %v102
    %v142 = vunpack.c.l.b16 %v103
    %v143 = vunpack.c.l.b16 %v104
    %v144 = vunpack.c.l.b16 %v105
    %v145 = vunpack.c.l.b16 %v106
    %v146 = vunpack.c.l.b16 %v107
    %v147 = vunpack.c.l.b16 %v108
    %v148 = vunpack.c.l.b16 %v109
    %v149 = vunpack.c.l.b16 %v110
    %v150 = vunpack.c.l.b16 %v111
    %v151 = vunpack.c.l.b16 %v112
    %v152 = vunpack.c.l.b16 %v113
    %v153 = vunpack.c.l.b16 %v114
    %v154 = vunpack.c.l.b16 %v115
    %v155 = vpack.c.b16 %v140, %v139
    %v156 = vpack.c.b16 %v142, %v141
    %v157 = vpack.c.b16 %v144, %v143
    %v158 = vpack.c.b16 %v146, %v145
    %v159 = vpack.c.b16 %v148, %v147
    %v160 = vpack.c.b16 %v150, %v149
    %v161 = vpack.c.b16 %v152, %v151
    %v162 = vpack.c.b16 %v154, %v153
    %171 = vmatprep.subr.bf16.mxu0 0
    %172 = vmatpush1.bf16.msra.mxu0 %v155
    %173 = vmatprep.subr.bf16.mxu0 0
    %174 = vmatpush1.bf16.msra.mxu0 %v156
    %175 = vmatprep.subr.bf16.mxu0 0
    %176 = vmatpush1.bf16.msra.mxu0 %v157
    %177 = vmatprep.subr.bf16.mxu0 0
    %178 = vmatpush1.bf16.msra.mxu0 %v158
    %179 = vmatprep.subr.bf16.mxu0 0
    %180 = vmatpush1.bf16.msra.mxu0 %v159
    %181 = vmatprep.subr.bf16.mxu0 0
    %182 = vmatpush1.bf16.msra.mxu0 %v160
    %183 = vmatprep.subr.bf16.mxu0 0
    %184 = vmatpush1.bf16.msra.mxu0 %v161
    %185 = vmatprep.subr.bf16.mxu0 0
    %186 = vmatpush1.bf16.msra.mxu0 %v162
    %187 = vmatprep.subr.bf16.mxu0 0
    %188 = vmatpush1.bf16.msra.mxu0 0
    %189 = vmatprep.subr.bf16.mxu0 0
    %190 = vmatpush1.bf16.msra.mxu0 0
    %191 = vmatprep.subr.bf16.mxu0 0
    %192 = vmatpush1.bf16.msra.mxu0 0
    %193 = vmatprep.subr.bf16.mxu0 0
    %194 = vmatpush1.bf16.msra.mxu0 0
    %195 = vmatprep.subr.bf16.mxu0 0
    %196 = vmatpush1.bf16.msra.mxu0 0
    %197 = vmatprep.subr.bf16.mxu0 0
    %198 = vmatpush1.bf16.msra.mxu0 0
    %199 = vmatprep.subr.bf16.mxu0 0
    %200 = vmatpush1.bf16.msra.mxu0 0
    %201 = vmatprep.subr.bf16.mxu0 0
    %202 = vmatpush1.bf16.msra.mxu0 0
    %203 = vmatprep.mubr.bf16.mxu0 0
    %204 = vmatmul.mubr.bf16.gmra.mrb[0].mxu0 %v99
    %v205 = vpop.f32.mrb[0].mxu0
    %v206 = vadd.f32 %v121, %v205
    %v207 = vpop.f32.mrb[0].mxu0
    %v208 = vpop.f32.mrb[0].mxu0
    %v209 = vadd.f32 %v121, %v208
    %v210 = vpop.f32.mrb[0].mxu0
    %211 = vdwg.mxu0
    %212 = vst.msk [vmem:[#allocation2] sm:$0xff] %vm52, %v206
    %213 = vst.msk [vmem:[#allocation2 + $0x8] sm:$0xff] %vm52, %v209
    // Predicated region
    $region22: #{tpu_custom_call.1} parent=1 // pred_check
      _
    $region23: #{tpu_custom_call.1} parent=1 // pred_check_branch
      %215 = sbr.rel (0) target = $region25
    $region24: #{tpu_custom_call.1} parent=1 // pred_region
      %s217 = ssub.s32 256, 256
      %218 = vsyncadd [#allocation3], %s217
      %s219 = sshll.u32 [#allocation2], 4
      %s220 = int_to_ptr.vmem [resolvable:$true] %s219
      %225 = dma.vmem_to_hbm [thread:$0]  %s220, 256, %s5, [#allocation3], 128, 128, 8
    $region25: #{tpu_custom_call.1} parent=1 // pred_fallthru
      _
    // Predicated region
    $region26: #{tpu_custom_call.1} parent=1 // pred_check
      _
    $region27: #{tpu_custom_call.1} parent=1 // pred_check_branch
      %227 = sbr.rel (0) target = $region29
    $region28: #{tpu_custom_call.1} parent=1 // pred_region
      %228 = dma.done [#allocation3], 256
    $region29: #{tpu_custom_call.1} parent=1 // pred_fallthru
      _
    %229 = vsyncpa [#allocation3], 1

</llo_original>
